<compile_context>
chip_gen: v7x
topology: tpu7x:2x2x1
jax: 0.10.0
libtpu: 0.0.40
codegen_flags: <defaults>
</compile_context>

<pallas_src>
import jax
import jax.numpy as jnp
from jax.experimental import pallas as pl
from jax.experimental.pallas import tpu as pltpu

_MiB = 1024 * 1024


def attention_kernel(x_ref, w_ref, b_ref, out_ref):
    # x_ref: (BB, T, D) VMEM; w_ref: (1, D) VMEM; b_ref: (1,) SMEM;
    # out_ref: (BB, D) VMEM.
    x = x_ref[...]                              # native dtype; no blanket f32 copy
    w = w_ref[...].astype(jnp.float32)          # (1, D)
    b = b_ref[0]                                # scalar from SMEM

    # Linear(D -> 1) + tanh: VPU multiply + lane (XLU) reduction, f32 accumulation.
    # For f32 x the astype is a no-op; for sub-f32 x the promotion feeds straight
    # into the reduce instead of being bound as a standalone (BB, T, D) copy.
    score = jnp.tanh(jnp.sum(x.astype(jnp.float32) * w, axis=-1) + b)   # (BB, T)

    # Numerically-stable softmax statistics over the sequence (last) axis.
    m = jnp.max(score, axis=-1, keepdims=True)                          # (BB, 1)
    e = jnp.exp(score - m)                                              # (BB, T)
    denom = jnp.sum(e, axis=-1, keepdims=True)                          # (BB, 1)

    # Weighted sum over T; softmax normalization folded into one (BB, D) scale.
    if x.dtype == jnp.float32:
        # f32 path: VPU multiply + sublane (XLU) reduce; kernel stays DMA-bound.
        ctx = jnp.sum(x * e[:, :, None], axis=1)                        # (BB, D)
    else:
        # Sub-f32 (bf16/fp8) path: stream the T reduction through the MXU with
        # f32 accumulation -- no materialized (BB, T, D) f32 temporary, and the
        # XLU/VALU slots stay free after the bf16 HBM-bandwidth win.
        ctx = jnp.einsum(
            "bqt,btd->bqd", e[:, None, :].astype(x.dtype), x,
            preferred_element_type=jnp.float32)[:, 0]                   # (BB, D)

    ctx = ctx * pl.reciprocal(denom, approx=False)   # exact recip keeps 1e-5 tol
    out_ref[...] = ctx.astype(out_ref.dtype)


def _tpu_budgets():
    """Generation-aware VMEM budgeting.

    Returns (block_budget_bytes, vmem_limit_bytes, tensorcores_per_chip)."""
    vmem_cap = 64 * _MiB  # conservative default (v7x-class) if the query fails
    try:
        vmem_cap = int(getattr(pltpu.get_tpu_info(), "vmem_capacity_bytes",
                               vmem_cap))
    except Exception:
        pass
    if vmem_cap >= 96 * _MiB:
        # v5e / v6e: 128 MiB physical VMEM, single TensorCore per chip.
        return 64 * _MiB, 96 * _MiB, 1
    # v7x: 64 MiB physical per TensorCore (32 MiB scoped default), 2 TCs/chip.
    return 20 * _MiB, 32 * _MiB, 2


def _choose_block_b(B, T, D, itemsize, vmem_budget, cores):
    """Batch rows per grid step, sized from *padded* VMEM tile footprints."""
    d_pad = -(-D // 128) * 128                  # lane padding (528 -> 640)
    sub = 8 * max(1, 4 // itemsize)             # sublane packing: f32 8, bf16 16
    t_pad = -(-T // sub) * sub
    # Double-buffered input tile + one f32 working copy + output/accumulators.
    per_row = 2 * t_pad * d_pad * itemsize + t_pad * d_pad * 4 + 4 * d_pad * 4
    cap = max(1, vmem_budget // per_row)
    # Keep >= 2 grid steps per TensorCore (megacore sharding + software
    # pipelining) whenever blocks can stay sublane-aligned (>= 8 rows each).
    min_steps = 2 * cores
    if B // min_steps >= 8:
        cap = min(cap, B // min_steps)
    cap = min(cap, B)
    if cap >= 8:
        candidates = list(range(8, cap + 1, 8))
        divisors = [bb for bb in candidates if B % bb == 0]
        if divisors:
            return divisors[-1]                 # biggest exact divisor: no padding
        # Otherwise: the multiple of 8 that minimizes batch padding (larger wins ties).
        return min(candidates, key=lambda bb: ((-(-B // bb)) * bb - B, -bb))
    # Tiny batch (or huge T): full batch block (<= 8 rows) or one 8-row block.
    return B if B <= 8 else 8


def attention_forward(x, w, b, *, block_b=None):
    """x: (B, T, D); w: Linear weight of size D (any of (1,D)/(D,1)/(D,));
    b: bias of size 1. Returns (B, D)."""
    B, T, D = x.shape
    w = jnp.asarray(w).reshape(1, D)
    b = jnp.asarray(b).reshape(-1)[:1]

    budget, vmem_limit, cores = _tpu_budgets()
    if block_b is None:
        block_b = _choose_block_b(B, T, D, x.dtype.itemsize, budget, cores)

    # Pad the batch so the grid tiles it exactly. Padded rows are zeros: their
    # softmax is uniform, their context is 0, and they're sliced off below.
    b_pad = -(-B // block_b) * block_b
    if b_pad != B:
        x = jnp.pad(x, ((0, b_pad - B), (0, 0), (0, 0)))
    grid = (b_pad // block_b,)

    itemsize = x.dtype.itemsize
    cost = pl.CostEstimate(
        flops=4 * B * T * D,                       # score dot + weighted sum
        transcendentals=2 * B * T,                 # tanh + exp per timestep
        bytes_accessed=(b_pad * T * D + b_pad * D) * itemsize
        + D * w.dtype.itemsize + b.dtype.itemsize,
    )

    out = pl.pallas_call(
        attention_kernel,
        out_shape=jax.ShapeDtypeStruct((b_pad, D), x.dtype),
        grid_spec=pltpu.PrefetchScalarGridSpec(
            num_scalar_prefetch=0,
            grid=grid,
            in_specs=[
                pl.BlockSpec((block_b, T, D), lambda i: (i, 0, 0)),
                pl.BlockSpec((1, D), lambda i: (0, 0)),
                pl.BlockSpec(memory_space=pltpu.MemorySpace.SMEM),  # bias scalar
            ],
            out_specs=pl.BlockSpec((block_b, D), lambda i: (i, 0)),
        ),
        compiler_params=pltpu.CompilerParams(
            dimension_semantics=("parallel",),
            vmem_limit_bytes=vmem_limit,
        ),
        cost_estimate=cost,
    )(x, w, b)
    return out[:B] if b_pad != B else out


def attention_reference(x, w, b):
    """Pure-JAX reference matching the PyTorch forward exactly."""
    w = jnp.asarray(w).reshape(-1)
    b = jnp.asarray(b).reshape(-1)[0]
    score = jnp.tanh(jnp.einsum("btd,d->bt", x, w) + b)       # (B, T)
    weights = jax.nn.softmax(score, axis=1)[..., None]        # (B, T, 1)
    return jnp.sum(x * weights, axis=1)                       # (B, D)


if __name__ == "__main__":
    # Shapes consistent with TwoBranchNet's attention input:
    # D = 128*4 + 16 = 528 features, T = pad_len // 4 sequence steps.
    B, T, D = 16, 8, 528

    key = jax.random.PRNGKey(0)
    kx, kw, kb = jax.random.split(key, 3)

    x = jax.random.normal(kx, (B, T, D), dtype=jnp.float32)
    # Deterministic "Linear(input_dim, 1)" params (synthetic init, not a checkpoint).
    bound = 1.0 / jnp.sqrt(D)
    w = jax.random.uniform(kw, (1, D), minval=-bound, maxval=bound, dtype=jnp.float32)
    b = jax.random.uniform(kb, (1,), minval=-bound, maxval=bound, dtype=jnp.float32)

    out = attention_forward(x, w, b)
    out = jax.block_until_ready(out)

    ref = attention_reference(x, w, b)
    assert out.shape == (B, D)
    assert jnp.allclose(out, ref, atol=1e-5, rtol=1e-5), (
        f"max abs err {jnp.max(jnp.abs(out - ref))}"
    )

    print("KERNEL_OK")
</pallas_src>

<mosaic_0001>
module attributes {stable_mosaic.version = 11 : i64} {
  func.func @attention_kernel(%arg0: i32, %arg1: memref<16x8x528xf32, #tpu.memory_space<vmem>>, %arg2: memref<1x528xf32, #tpu.memory_space<vmem>>, %arg3: memref<1xf32, #tpu.memory_space<smem>>, %arg4: memref<16x528xf32, #tpu.memory_space<vmem>>) attributes {dimension_semantics = [#tpu.dimension_semantics<parallel>], iteration_bounds = array<i64: 1>, scalar_prefetch = 0 : i64, scratch_operands = 0 : i64, tpu.core_type = #tpu.core_type<tc>, window_params = [{transform_indices = @transform_0, window_bounds = array<i64: 16, 8, 528>}, {pipeline_mode = #tpu.pipeline_mode<synchronous>, transform_indices = @transform_1, window_bounds = array<i64: 1, 528>}, {transform_indices = @transform_2, window_bounds = array<i64: 1>}, {transform_indices = @transform_3, window_bounds = array<i64: 16, 528>}]} {
    %c0 = arith.constant 0 : index
    %c0_0 = arith.constant 0 : index
    %c0_1 = arith.constant 0 : index
    %0 = vector.load %arg1[%c0, %c0_0, %c0_1] : memref<16x8x528xf32, #tpu.memory_space<vmem>>, vector<16x8x528xf32>
    %c0_2 = arith.constant 0 : index
    %c0_3 = arith.constant 0 : index
    %1 = vector.load %arg2[%c0_2, %c0_3] : memref<1x528xf32, #tpu.memory_space<vmem>>, vector<1x528xf32>
    %c0_4 = arith.constant 0 : index
    %2 = memref.load %arg3[%c0_4] : memref<1xf32, #tpu.memory_space<smem>>
    %3 = vector.shape_cast %1 : vector<1x528xf32> to vector<1x1x528xf32>
    %4 = vector.broadcast %3 : vector<1x1x528xf32> to vector<16x8x528xf32>
    %5 = arith.mulf %0, %4 : vector<16x8x528xf32>
    %cst = arith.constant dense<0.000000e+00> : vector<16x8xf32>
    %6 = vector.multi_reduction <add>, %5, %cst [2] : vector<16x8x528xf32> to vector<16x8xf32>
    %7 = vector.broadcast %2 : f32 to vector<16x8xf32>
    %8 = arith.addf %6, %7 : vector<16x8xf32>
    %9 = math.tanh %8 : vector<16x8xf32>
    %cst_5 = arith.constant dense<0xFF800000> : vector<16xf32>
    %10 = vector.multi_reduction <maximumf>, %9, %cst_5 [1] : vector<16x8xf32> to vector<16xf32>
    %11 = vector.shape_cast %10 : vector<16xf32> to vector<16x1xf32>
    %12 = vector.broadcast %11 : vector<16x1xf32> to vector<16x8xf32>
    %13 = arith.subf %9, %12 : vector<16x8xf32>
    %14 = math.exp %13 : vector<16x8xf32>
    %cst_6 = arith.constant dense<0.000000e+00> : vector<16xf32>
    %15 = vector.multi_reduction <add>, %14, %cst_6 [1] : vector<16x8xf32> to vector<16xf32>
    %16 = vector.shape_cast %15 : vector<16xf32> to vector<16x1xf32>
    %17 = vector.shape_cast %14 : vector<16x8xf32> to vector<16x8x1xf32>
    %18 = vector.broadcast %17 : vector<16x8x1xf32> to vector<16x8x528xf32>
    %19 = arith.mulf %0, %18 : vector<16x8x528xf32>
    %cst_7 = arith.constant dense<0.000000e+00> : vector<16x528xf32>
    %20 = vector.multi_reduction <add>, %19, %cst_7 [1] : vector<16x8x528xf32> to vector<16x528xf32>
    %21 = tpu.reciprocal %16 : vector<16x1xf32> -> vector<16x1xf32>
    %22 = vector.broadcast %21 : vector<16x1xf32> to vector<16x528xf32>
    %23 = arith.mulf %20, %22 : vector<16x528xf32>
    %c0_8 = arith.constant 0 : index
    %c0_9 = arith.constant 0 : index
    %24 = vector.load %arg4[%c0_8, %c0_9] : memref<16x528xf32, #tpu.memory_space<vmem>>, vector<16x528xf32>
    tpu.vector_store %arg4[%c0_8, %c0_9], %23 {strides = array<i32>} : memref<16x528xf32, #tpu.memory_space<vmem>>, vector<16x528xf32>,
    return
  }
  func.func @transform_0(%arg0: i32) -> (i32, i32, i32) {
    %c0_i32 = arith.constant 0 : i32
    %c0_i32_0 = arith.constant 0 : i32
    %c0_i32_1 = arith.constant 0 : i32
    return %arg0, %c0_i32, %c0_i32_0 : i32, i32, i32
  }
  func.func @transform_1(%arg0: i32) -> (i32, i32) {
    %c0_i32 = arith.constant 0 : i32
    %c0_i32_0 = arith.constant 0 : i32
    %c0_i32_1 = arith.constant 0 : i32
    return %c0_i32, %c0_i32_0 : i32, i32
  }
  func.func @transform_2(%arg0: i32) -> i32 {
    %c0_i32 = arith.constant 0 : i32
    %c0_i32_0 = arith.constant 0 : i32
    return %c0_i32 : i32
  }
  func.func @transform_3(%arg0: i32) -> (i32, i32) {
    %c0_i32 = arith.constant 0 : i32
    %c0_i32_0 = arith.constant 0 : i32
    return %arg0, %c0_i32 : i32, i32
  }
}

</mosaic_0001>

<llo_original>
// kernel: tpu_custom_call.1
$region0: #{tpu_custom_call.1}
  #allocation0 [shape = 'u32[]', space=smem, size = 0x4, offset = 0x4, fixed_abs, tag = 'smem constant byte address 0x4 - core index']
  #allocation1 [shape = 'u32[144,128]{1,0:T(1,128)}', space=vmem, size = 0x12000, scoped, tag = 'internal scratch']
  #allocation2 [shape = 'f32[1]{0:T(128)S(6)}', space=smem, size = 0x200, scoped, tag = 'scoped memory for tpu_custom_call.1']
  %s0 = inlined_call_operand.hbm [shape: f32[16,8,528], index: 0, kind: input, shape index: {}]
  %s1 = inlined_call_operand.vmem [shape: f32[1,528], index: 1, kind: input, shape index: {}]
  %s2 = inlined_call_operand.<no memory space> [shape: f32[1], index: 2, kind: input, shape index: {}]
  %s3 = inlined_call_operand.hbm [shape: f32[16,528], index: 3, kind: output, shape index: {}]
  %s4 = sld [smem:[#allocation0]]
  $region26: #{tpu_custom_call.1} parent=0
    _
  %s6 = ssub.s32 1, %s4
  %s7 = scalar_select 0, %s6, %s4
  %8 = sst [smem:[#allocation2]] %s2
  $region1: #{tpu_custom_call.1} parent=0
    #allocation3 [shape = 'u8[327680]{0}', space=vmem, size = 0x50000, scoped, tag = 'input window, operand 0, single buffered']
    #allocation4 [shape = 's32[1]{0}', space=sflag, size = 0x4, scoped, tag = 'scoped memory for tpu_custom_call.1']
    #allocation5 [shape = 's32[1]{0}', space=sflag, size = 0x4, scoped, tag = 'scoped memory for tpu_custom_call.1']
    #allocation6 [shape = 'u8[40960]{0}', space=vmem, size = 0xa000, scoped, tag = 'output window, operand 0, single buffered']
    %9 = vsyncpa [#allocation4], 0
    %10 = vsyncpa [#allocation5], 0
    // Predicated region
    $region2: #{tpu_custom_call.1} parent=1 // pred_check
      _
    $region3: #{tpu_custom_call.1} parent=1 // pred_check_branch
      %12 = sbr.rel (0) target = $region5
    $region4: #{tpu_custom_call.1} parent=1 // pred_region
      %s14 = ssub.s32 10240, 10240
      %15 = vsyncadd [#allocation4], %s14
      %s16 = sshll.u32 [#allocation3], 4
      %s17 = int_to_ptr.vmem [resolvable:$true] %s16
      %22 = dma.hbm_to_vmem [thread:$0]  %s0, 10240, %s17, [#allocation4], 640, 640, 40
    $region5: #{tpu_custom_call.1} parent=1 // pred_fallthru
      _
    // Predicated region
    $region6: #{tpu_custom_call.1} parent=1 // pred_check
      _
    $region7: #{tpu_custom_call.1} parent=1 // pred_check_branch
      %24 = sbr.rel (0) target = $region9
    $region8: #{tpu_custom_call.1} parent=1 // pred_region
      _
    $region9: #{tpu_custom_call.1} parent=1 // pred_fallthru
      _
    // Predicated region
    $region10: #{tpu_custom_call.1} parent=1 // pred_check
      _
    $region11: #{tpu_custom_call.1} parent=1 // pred_check_branch
      %26 = sbr.rel (0) target = $region13
    $region12: #{tpu_custom_call.1} parent=1 // pred_region
      _
    $region13: #{tpu_custom_call.1} parent=1 // pred_fallthru
      _
    // Predicated region
    $region14: #{tpu_custom_call.1} parent=1 // pred_check
      _
    $region15: #{tpu_custom_call.1} parent=1 // pred_check_branch
      %28 = sbr.rel (0) target = $region17
    $region16: #{tpu_custom_call.1} parent=1 // pred_region
      %29 = dma.done [#allocation4], 10240
    $region17: #{tpu_custom_call.1} parent=1 // pred_fallthru
      _
    %v30 = vld [vmem:[#allocation3] sm:$0xff]
    %v31 = vld [vmem:[#allocation3 + $0x8] sm:$0xff]
    %v32 = vld [vmem:[#allocation3 + $0x10] sm:$0xff]
    %v33 = vld [vmem:[#allocation3 + $0x18] sm:$0xff]
    %v34 = vld [vmem:[#allocation3 + $0x20] sm:$0xff]
    %v35 = vld [vmem:[#allocation3 + $0x28] sm:$0xff]
    %v36 = vld [vmem:[#allocation3 + $0x30] sm:$0xff]
    %v37 = vld [vmem:[#allocation3 + $0x38] sm:$0xff]
    %v38 = vld [vmem:[#allocation3 + $0x40] sm:$0xff]
    %v39 = vld [vmem:[#allocation3 + $0x48] sm:$0xff]
    %v40 = vld [vmem:[#allocation3 + $0x50] sm:$0xff]
    %v41 = vld [vmem:[#allocation3 + $0x58] sm:$0xff]
    %v42 = vld [vmem:[#allocation3 + $0x60] sm:$0xff]
    %v43 = vld [vmem:[#allocation3 + $0x68] sm:$0xff]
    %v44 = vld [vmem:[#allocation3 + $0x70] sm:$0xff]
    %v45 = vld [vmem:[#allocation3 + $0x78] sm:$0xff]
    %v46 = vld [vmem:[#allocation3 + $0x80] sm:$0xff]
    %v47 = vld [vmem:[#allocation3 + $0x88] sm:$0xff]
    %v48 = vld [vmem:[#allocation3 + $0x90] sm:$0xff]
    %v49 = vld [vmem:[#allocation3 + $0x98] sm:$0xff]
    %v50 = vld [vmem:[#allocation3 + $0xa0] sm:$0xff]
    %v51 = vld [vmem:[#allocation3 + $0xa8] sm:$0xff]
    %v52 = vld [vmem:[#allocation3 + $0xb0] sm:$0xff]
    %v53 = vld [vmem:[#allocation3 + $0xb8] sm:$0xff]
    %v54 = vld [vmem:[#allocation3 + $0xc0] sm:$0xff]
    %v55 = vld [vmem:[#allocation3 + $0xc8] sm:$0xff]
    %v56 = vld [vmem:[#allocation3 + $0xd0] sm:$0xff]
    %v57 = vld [vmem:[#allocation3 + $0xd8] sm:$0xff]
    %v58 = vld [vmem:[#allocation3 + $0xe0] sm:$0xff]
    %v59 = vld [vmem:[#allocation3 + $0xe8] sm:$0xff]
    %v60 = vld [vmem:[#allocation3 + $0xf0] sm:$0xff]
    %v61 = vld [vmem:[#allocation3 + $0xf8] sm:$0xff]
    %v62 = vld [vmem:[#allocation3 + $0x100] sm:$0xff]
    %v63 = vld [vmem:[#allocation3 + $0x108] sm:$0xff]
    %v64 = vld [vmem:[#allocation3 + $0x110] sm:$0xff]
    %v65 = vld [vmem:[#allocation3 + $0x118] sm:$0xff]
    %v66 = vld [vmem:[#allocation3 + $0x120] sm:$0xff]
    %v67 = vld [vmem:[#allocation3 + $0x128] sm:$0xff]
    %v68 = vld [vmem:[#allocation3 + $0x130] sm:$0xff]
    %v69 = vld [vmem:[#allocation3 + $0x138] sm:$0xff]
    %v70 = vld [vmem:[#allocation3 + $0x140] sm:$0xff]
    %v71 = vld [vmem:[#allocation3 + $0x148] sm:$0xff]
    %v72 = vld [vmem:[#allocation3 + $0x150] sm:$0xff]
    %v73 = vld [vmem:[#allocation3 + $0x158] sm:$0xff]
    %v74 = vld [vmem:[#allocation3 + $0x160] sm:$0xff]
    %v75 = vld [vmem:[#allocation3 + $0x168] sm:$0xff]
    %v76 = vld [vmem:[#allocation3 + $0x170] sm:$0xff]
    %v77 = vld [vmem:[#allocation3 + $0x178] sm:$0xff]
    %v78 = vld [vmem:[#allocation3 + $0x180] sm:$0xff]
    %v79 = vld [vmem:[#allocation3 + $0x188] sm:$0xff]
    %v80 = vld [vmem:[#allocation3 + $0x190] sm:$0xff]
    %v81 = vld [vmem:[#allocation3 + $0x198] sm:$0xff]
    %v82 = vld [vmem:[#allocation3 + $0x1a0] sm:$0xff]
    %v83 = vld [vmem:[#allocation3 + $0x1a8] sm:$0xff]
    %v84 = vld [vmem:[#allocation3 + $0x1b0] sm:$0xff]
    %v85 = vld [vmem:[#allocation3 + $0x1b8] sm:$0xff]
    %v86 = vld [vmem:[#allocation3 + $0x1c0] sm:$0xff]
    %v87 = vld [vmem:[#allocation3 + $0x1c8] sm:$0xff]
    %v88 = vld [vmem:[#allocation3 + $0x1d0] sm:$0xff]
    %v89 = vld [vmem:[#allocation3 + $0x1d8] sm:$0xff]
    %v90 = vld [vmem:[#allocation3 + $0x1e0] sm:$0xff]
    %v91 = vld [vmem:[#allocation3 + $0x1e8] sm:$0xff]
    %v92 = vld [vmem:[#allocation3 + $0x1f0] sm:$0xff]
    %v93 = vld [vmem:[#allocation3 + $0x1f8] sm:$0xff]
    %v94 = vld [vmem:[#allocation3 + $0x200] sm:$0xff]
    %v95 = vld [vmem:[#allocation3 + $0x208] sm:$0xff]
    %v96 = vld [vmem:[#allocation3 + $0x210] sm:$0xff]
    %v97 = vld [vmem:[#allocation3 + $0x218] sm:$0xff]
    %v98 = vld [vmem:[#allocation3 + $0x220] sm:$0xff]
    %v99 = vld [vmem:[#allocation3 + $0x228] sm:$0xff]
    %v100 = vld [vmem:[#allocation3 + $0x230] sm:$0xff]
    %v101 = vld [vmem:[#allocation3 + $0x238] sm:$0xff]
    %v102 = vld [vmem:[#allocation3 + $0x240] sm:$0xff]
    %v103 = vld [vmem:[#allocation3 + $0x248] sm:$0xff]
    %v104 = vld [vmem:[#allocation3 + $0x250] sm:$0xff]
    %v105 = vld [vmem:[#allocation3 + $0x258] sm:$0xff]
    %v106 = vld [vmem:[#allocation3 + $0x260] sm:$0xff]
    %v107 = vld [vmem:[#allocation3 + $0x268] sm:$0xff]
    %v108 = vld [vmem:[#allocation3 + $0x270] sm:$0xff]
    %v109 = vld [vmem:[#allocation3 + $0x278] sm:$0xff]
    %v110 = vld [vmem:[%s1] sm:$0x1f]
    %s111 = sld [smem:[#allocation2]]
    %v113 = vlaneseq
    %v114 = vshrl.u32 %v113, 7
    %v115 = vsub.s32 0, %v114
    %v116 = vrot.slane %v110, %v115
    %v117 = vlaneseq
    %v118 = vshrl.u32 %v117, 7
    %v119 = vsub.s32 1, %v118
    %v120 = vrot.slane %v110, %v119
    %v121 = vlaneseq
    %v122 = vshrl.u32 %v121, 7
    %v123 = vsub.s32 2, %v122
    %v124 = vrot.slane %v110, %v123
    %v125 = vlaneseq
    %v126 = vshrl.u32 %v125, 7
    %v127 = vsub.s32 3, %v126
    %v128 = vrot.slane %v110, %v127
    %v129 = vlaneseq
    %v130 = vshrl.u32 %v129, 7
    %v131 = vsub.s32 4, %v130
    %v132 = vrot.slane %v110, %v131
    %v138 = vmul.f32 %v30, %v116
    %v139 = vmul.f32 %v31, %v120
    %v140 = vmul.f32 %v32, %v124
    %v141 = vmul.f32 %v33, %v128
    %v142 = vmul.f32 %v34, %v132
    %v143 = vmul.f32 %v35, %v116
    %v144 = vmul.f32 %v36, %v120
    %v145 = vmul.f32 %v37, %v124
    %v146 = vmul.f32 %v38, %v128
    %v147 = vmul.f32 %v39, %v132
    %v148 = vmul.f32 %v40, %v116
    %v149 = vmul.f32 %v41, %v120
    %v150 = vmul.f32 %v42, %v124
    %v151 = vmul.f32 %v43, %v128
    %v152 = vmul.f32 %v44, %v132
    %v153 = vmul.f32 %v45, %v116
    %v154 = vmul.f32 %v46, %v120
    %v155 = vmul.f32 %v47, %v124
    %v156 = vmul.f32 %v48, %v128
    %v157 = vmul.f32 %v49, %v132
    %v158 = vmul.f32 %v50, %v116
    %v159 = vmul.f32 %v51, %v120
    %v160 = vmul.f32 %v52, %v124
    %v161 = vmul.f32 %v53, %v128
    %v162 = vmul.f32 %v54, %v132
    %v163 = vmul.f32 %v55, %v116
    %v164 = vmul.f32 %v56, %v120
    %v165 = vmul.f32 %v57, %v124
    %v166 = vmul.f32 %v58, %v128
    %v167 = vmul.f32 %v59, %v132
    %v168 = vmul.f32 %v60, %v116
    %v169 = vmul.f32 %v61, %v120
    %v170 = vmul.f32 %v62, %v124
    %v171 = vmul.f32 %v63, %v128
    %v172 = vmul.f32 %v64, %v132
    %v173 = vmul.f32 %v65, %v116
    %v174 = vmul.f32 %v66, %v120
    %v175 = vmul.f32 %v67, %v124
    %v176 = vmul.f32 %v68, %v128
    %v177 = vmul.f32 %v69, %v132
    %v178 = vmul.f32 %v70, %v116
    %v179 = vmul.f32 %v71, %v120
    %v180 = vmul.f32 %v72, %v124
    %v181 = vmul.f32 %v73, %v128
    %v182 = vmul.f32 %v74, %v132
    %v183 = vmul.f32 %v75, %v116
    %v184 = vmul.f32 %v76, %v120
    %v185 = vmul.f32 %v77, %v124
    %v186 = vmul.f32 %v78, %v128
    %v187 = vmul.f32 %v79, %v132
    %v188 = vmul.f32 %v80, %v116
    %v189 = vmul.f32 %v81, %v120
    %v190 = vmul.f32 %v82, %v124
    %v191 = vmul.f32 %v83, %v128
    %v192 = vmul.f32 %v84, %v132
    %v193 = vmul.f32 %v85, %v116
    %v194 = vmul.f32 %v86, %v120
    %v195 = vmul.f32 %v87, %v124
    %v196 = vmul.f32 %v88, %v128
    %v197 = vmul.f32 %v89, %v132
    %v198 = vmul.f32 %v90, %v116
    %v199 = vmul.f32 %v91, %v120
    %v200 = vmul.f32 %v92, %v124
    %v201 = vmul.f32 %v93, %v128
    %v202 = vmul.f32 %v94, %v132
    %v203 = vmul.f32 %v95, %v116
    %v204 = vmul.f32 %v96, %v120
    %v205 = vmul.f32 %v97, %v124
    %v206 = vmul.f32 %v98, %v128
    %v207 = vmul.f32 %v99, %v132
    %v208 = vmul.f32 %v100, %v116
    %v209 = vmul.f32 %v101, %v120
    %v210 = vmul.f32 %v102, %v124
    %v211 = vmul.f32 %v103, %v128
    %v212 = vmul.f32 %v104, %v132
    %v213 = vmul.f32 %v105, %v116
    %v214 = vmul.f32 %v106, %v120
    %v215 = vmul.f32 %v107, %v124
    %v216 = vmul.f32 %v108, %v128
    %v217 = vmul.f32 %v109, %v132
    %v218 = vadd.f32 %v138, %v139
    %v219 = vadd.f32 %v218, %v140
    %v220 = vadd.f32 %v219, %v141
    %vm221 = vcmask 130048
    %v222 = vsel %vm221, %v142, 0.0
    %v223 = vadd.f32 %v220, %v222
    %224 = vadd.xlane.f32.xlu0 %v223
    %v225 = vpop.xlane.xlu0 %224
    %v226 = vadd.f32 %v143, %v144
    %v227 = vadd.f32 %v226, %v145
    %v228 = vadd.f32 %v227, %v146
    %v229 = vsel %vm221, %v147, 0.0
    %v230 = vadd.f32 %v228, %v229
    %231 = vadd.xlane.f32.xlu0 %v230
    %v232 = vpop.xlane.xlu0 %231
    %v233 = vadd.f32 %v148, %v149
    %v234 = vadd.f32 %v233, %v150
    %v235 = vadd.f32 %v234, %v151
    %v236 = vsel %vm221, %v152, 0.0
    %v237 = vadd.f32 %v235, %v236
    %238 = vadd.xlane.f32.xlu0 %v237
    %v239 = vpop.xlane.xlu0 %238
    %v240 = vadd.f32 %v153, %v154
    %v241 = vadd.f32 %v240, %v155
    %v242 = vadd.f32 %v241, %v156
    %v243 = vsel %vm221, %v157, 0.0
    %v244 = vadd.f32 %v242, %v243
    %245 = vadd.xlane.f32.xlu0 %v244
    %v246 = vpop.xlane.xlu0 %245
    %v247 = vadd.f32 %v158, %v159
    %v248 = vadd.f32 %v247, %v160
    %v249 = vadd.f32 %v248, %v161
    %v250 = vsel %vm221, %v162, 0.0
    %v251 = vadd.f32 %v249, %v250
    %252 = vadd.xlane.f32.xlu0 %v251
    %v253 = vpop.xlane.xlu0 %252
    %v254 = vadd.f32 %v163, %v164
    %v255 = vadd.f32 %v254, %v165
    %v256 = vadd.f32 %v255, %v166
    %v257 = vsel %vm221, %v167, 0.0
    %v258 = vadd.f32 %v256, %v257
    %259 = vadd.xlane.f32.xlu0 %v258
    %v260 = vpop.xlane.xlu0 %259
    %v261 = vadd.f32 %v168, %v169
    %v262 = vadd.f32 %v261, %v170
    %v263 = vadd.f32 %v262, %v171
    %v264 = vsel %vm221, %v172, 0.0
    %v265 = vadd.f32 %v263, %v264
    %266 = vadd.xlane.f32.xlu0 %v265
    %v267 = vpop.xlane.xlu0 %266
    %v268 = vadd.f32 %v173, %v174
    %v269 = vadd.f32 %v268, %v175
    %v270 = vadd.f32 %v269, %v176
    %v271 = vsel %vm221, %v177, 0.0
    %v272 = vadd.f32 %v270, %v271
    %273 = vadd.xlane.f32.xlu0 %v272
    %v274 = vpop.xlane.xlu0 %273
    %v275 = vadd.f32 %v178, %v179
    %v276 = vadd.f32 %v275, %v180
    %v277 = vadd.f32 %v276, %v181
    %v278 = vsel %vm221, %v182, 0.0
    %v279 = vadd.f32 %v277, %v278
    %280 = vadd.xlane.f32.xlu0 %v279
    %v281 = vpop.xlane.xlu0 %280
    %v282 = vadd.f32 %v183, %v184
    %v283 = vadd.f32 %v282, %v185
    %v284 = vadd.f32 %v283, %v186
    %v285 = vsel %vm221, %v187, 0.0
    %v286 = vadd.f32 %v284, %v285
    %287 = vadd.xlane.f32.xlu0 %v286
    %v288 = vpop.xlane.xlu0 %287
    %v289 = vadd.f32 %v188, %v189
    %v290 = vadd.f32 %v289, %v190
    %v291 = vadd.f32 %v290, %v191
    %v292 = vsel %vm221, %v192, 0.0
    %v293 = vadd.f32 %v291, %v292
    %294 = vadd.xlane.f32.xlu0 %v293
    %v295 = vpop.xlane.xlu0 %294
    %v296 = vadd.f32 %v193, %v194
    %v297 = vadd.f32 %v296, %v195
    %v298 = vadd.f32 %v297, %v196
    %v299 = vsel %vm221, %v197, 0.0
    %v300 = vadd.f32 %v298, %v299
    %301 = vadd.xlane.f32.xlu0 %v300
    %v302 = vpop.xlane.xlu0 %301
    %v303 = vadd.f32 %v198, %v199
    %v304 = vadd.f32 %v303, %v200
    %v305 = vadd.f32 %v304, %v201
    %v306 = vsel %vm221, %v202, 0.0
    %v307 = vadd.f32 %v305, %v306
    %308 = vadd.xlane.f32.xlu0 %v307
    %v309 = vpop.xlane.xlu0 %308
    %v310 = vadd.f32 %v203, %v204
    %v311 = vadd.f32 %v310, %v205
    %v312 = vadd.f32 %v311, %v206
    %v313 = vsel %vm221, %v207, 0.0
    %v314 = vadd.f32 %v312, %v313
    %315 = vadd.xlane.f32.xlu0 %v314
    %v316 = vpop.xlane.xlu0 %315
    %v317 = vadd.f32 %v208, %v209
    %v318 = vadd.f32 %v317, %v210
    %v319 = vadd.f32 %v318, %v211
    %v320 = vsel %vm221, %v212, 0.0
    %v321 = vadd.f32 %v319, %v320
    %322 = vadd.xlane.f32.xlu0 %v321
    %v323 = vpop.xlane.xlu0 %322
    %v324 = vadd.f32 %v213, %v214
    %v325 = vadd.f32 %v324, %v215
    %v326 = vadd.f32 %v325, %v216
    %v327 = vsel %vm221, %v217, 0.0
    %v328 = vadd.f32 %v326, %v327
    %329 = vadd.xlane.f32.xlu0 %v328
    %v330 = vpop.xlane.xlu0 %329
    %v331 = vstv %s111
    %v332 = vadd.f32 %v225, %v331
    %v333 = vadd.f32 %v232, %v331
    %v334 = vadd.f32 %v239, %v331
    %v335 = vadd.f32 %v246, %v331
    %v336 = vadd.f32 %v253, %v331
    %v337 = vadd.f32 %v260, %v331
    %v338 = vadd.f32 %v267, %v331
    %v339 = vadd.f32 %v274, %v331
    %v340 = vadd.f32 %v281, %v331
    %v341 = vadd.f32 %v288, %v331
    %v342 = vadd.f32 %v295, %v331
    %v343 = vadd.f32 %v302, %v331
    %v344 = vadd.f32 %v309, %v331
    %v345 = vadd.f32 %v316, %v331
    %v346 = vadd.f32 %v323, %v331
    %v347 = vadd.f32 %v330, %v331
    %v348 = vtanh.pop %v332
    %v349 = vtanh.pop %v333
    %v350 = vtanh.pop %v334
    %v351 = vtanh.pop %v335
    %v352 = vtanh.pop %v336
    %v353 = vtanh.pop %v337
    %v354 = vtanh.pop %v338
    %v355 = vtanh.pop %v339
    %v356 = vtanh.pop %v340
    %v357 = vtanh.pop %v341
    %v358 = vtanh.pop %v342
    %v359 = vtanh.pop %v343
    %v360 = vtanh.pop %v344
    %v361 = vtanh.pop %v345
    %v362 = vtanh.pop %v346
    %v363 = vtanh.pop %v347
    %v380 = vlaneseq
    %v381 = vand.u32 %v380, 127
    %v382 = vlaneseq
    %v383 = vshrl.u32 %v382, 7
    %v384 = vsub.s32 %v381, %v383
    %v385 = vrot.slane %v348, %v384
    %v386 = vlaneseq
    %v387 = vshrl.u32 %v386, 7
    %v388 = vsub.s32 %v381, %v387
    %v389 = vrot.slane %v349, %v388
    %v390 = vlaneseq
    %v391 = vshrl.u32 %v390, 7
    %v392 = vsub.s32 %v381, %v391
    %v393 = vrot.slane %v350, %v392
    %v394 = vlaneseq
    %v395 = vshrl.u32 %v394, 7
    %v396 = vsub.s32 %v381, %v395
    %v397 = vrot.slane %v351, %v396
    %v398 = vlaneseq
    %v399 = vshrl.u32 %v398, 7
    %v400 = vsub.s32 %v381, %v399
    %v401 = vrot.slane %v352, %v400
    %v402 = vlaneseq
    %v403 = vshrl.u32 %v402, 7
    %v404 = vsub.s32 %v381, %v403
    %v405 = vrot.slane %v353, %v404
    %v406 = vlaneseq
    %v407 = vshrl.u32 %v406, 7
    %v408 = vsub.s32 %v381, %v407
    %v409 = vrot.slane %v354, %v408
    %v410 = vlaneseq
    %v411 = vshrl.u32 %v410, 7
    %v412 = vsub.s32 %v381, %v411
    %v413 = vrot.slane %v355, %v412
    %v414 = vlaneseq
    %v415 = vshrl.u32 %v414, 7
    %v416 = vsub.s32 %v381, %v415
    %v417 = vrot.slane %v356, %v416
    %v418 = vlaneseq
    %v419 = vshrl.u32 %v418, 7
    %v420 = vsub.s32 %v381, %v419
    %v421 = vrot.slane %v357, %v420
    %v422 = vlaneseq
    %v423 = vshrl.u32 %v422, 7
    %v424 = vsub.s32 %v381, %v423
    %v425 = vrot.slane %v358, %v424
    %v426 = vlaneseq
    %v427 = vshrl.u32 %v426, 7
    %v428 = vsub.s32 %v381, %v427
    %v429 = vrot.slane %v359, %v428
    %v430 = vlaneseq
    %v431 = vshrl.u32 %v430, 7
    %v432 = vsub.s32 %v381, %v431
    %v433 = vrot.slane %v360, %v432
    %v434 = vlaneseq
    %v435 = vshrl.u32 %v434, 7
    %v436 = vsub.s32 %v381, %v435
    %v437 = vrot.slane %v361, %v436
    %v438 = vlaneseq
    %v439 = vshrl.u32 %v438, 7
    %v440 = vsub.s32 %v381, %v439
    %v441 = vrot.slane %v362, %v440
    %v442 = vlaneseq
    %v443 = vshrl.u32 %v442, 7
    %v444 = vsub.s32 %v381, %v443
    %v445 = vrot.slane %v363, %v444
    %vm446 = vcmask 1041409
    %v447 = vsel %vm446, %v389, %v385
    %vm448 = vcmask 1042434
    %v449 = vsel %vm448, %v393, %v447
    %vm450 = vcmask 1043459
    %v451 = vsel %vm450, %v397, %v449
    %vm452 = vcmask 1044484
    %v453 = vsel %vm452, %v401, %v451
    %vm454 = vcmask 1045509
    %v455 = vsel %vm454, %v405, %v453
    %vm456 = vcmask 1046534
    %v457 = vsel %vm456, %v409, %v455
    %vm458 = vcmask 1047559
    %v459 = vsel %vm458, %v413, %v457
    %v460 = vsel %vm446, %v421, %v417
    %v461 = vsel %vm448, %v425, %v460
    %v462 = vsel %vm450, %v429, %v461
    %v463 = vsel %vm452, %v433, %v462
    %v464 = vsel %vm454, %v437, %v463
    %v465 = vsel %vm456, %v441, %v464
    %v466 = vsel %vm458, %v445, %v465
    %vm469 = vcmask 64512
    %v470 = vsel %vm469, %v459, -inf
    %471 = vmax.xlane.f32.xlu0 %v470
    %v472 = vpop.xlane.xlu0 %471
    %v473 = vsel %vm469, %v466, -inf
    %474 = vmax.xlane.f32.xlu0 %v473
    %v475 = vpop.xlane.xlu0 %474
    %v478 = vlaneseq
    %v479 = vshrl.u32 %v478, 7
    %v480 = vsub.s32 0, %v479
    %v481 = vrot.slane %v472, %v480
    %v482 = vlaneseq
    %v483 = vshrl.u32 %v482, 7
    %v484 = vsub.s32 1, %v483
    %v485 = vrot.slane %v472, %v484
    %v486 = vlaneseq
    %v487 = vshrl.u32 %v486, 7
    %v488 = vsub.s32 2, %v487
    %v489 = vrot.slane %v472, %v488
    %v490 = vlaneseq
    %v491 = vshrl.u32 %v490, 7
    %v492 = vsub.s32 3, %v491
    %v493 = vrot.slane %v472, %v492
    %v494 = vlaneseq
    %v495 = vshrl.u32 %v494, 7
    %v496 = vsub.s32 4, %v495
    %v497 = vrot.slane %v472, %v496
    %v498 = vlaneseq
    %v499 = vshrl.u32 %v498, 7
    %v500 = vsub.s32 5, %v499
    %v501 = vrot.slane %v472, %v500
    %v502 = vlaneseq
    %v503 = vshrl.u32 %v502, 7
    %v504 = vsub.s32 6, %v503
    %v505 = vrot.slane %v472, %v504
    %v506 = vlaneseq
    %v507 = vshrl.u32 %v506, 7
    %v508 = vsub.s32 7, %v507
    %v509 = vrot.slane %v472, %v508
    %v510 = vlaneseq
    %v511 = vshrl.u32 %v510, 7
    %v512 = vsub.s32 0, %v511
    %v513 = vrot.slane %v475, %v512
    %v514 = vlaneseq
    %v515 = vshrl.u32 %v514, 7
    %v516 = vsub.s32 1, %v515
    %v517 = vrot.slane %v475, %v516
    %v518 = vlaneseq
    %v519 = vshrl.u32 %v518, 7
    %v520 = vsub.s32 2, %v519
    %v521 = vrot.slane %v475, %v520
    %v522 = vlaneseq
    %v523 = vshrl.u32 %v522, 7
    %v524 = vsub.s32 3, %v523
    %v525 = vrot.slane %v475, %v524
    %v526 = vlaneseq
    %v527 = vshrl.u32 %v526, 7
    %v528 = vsub.s32 4, %v527
    %v529 = vrot.slane %v475, %v528
    %v530 = vlaneseq
    %v531 = vshrl.u32 %v530, 7
    %v532 = vsub.s32 5, %v531
    %v533 = vrot.slane %v475, %v532
    %v534 = vlaneseq
    %v535 = vshrl.u32 %v534, 7
    %v536 = vsub.s32 6, %v535
    %v537 = vrot.slane %v475, %v536
    %v538 = vlaneseq
    %v539 = vshrl.u32 %v538, 7
    %v540 = vsub.s32 7, %v539
    %v541 = vrot.slane %v475, %v540
    %v558 = vsub.f32 %v348, %v481
    %v559 = vsub.f32 %v349, %v485
    %v560 = vsub.f32 %v350, %v489
    %v561 = vsub.f32 %v351, %v493
    %v562 = vsub.f32 %v352, %v497
    %v563 = vsub.f32 %v353, %v501
    %v564 = vsub.f32 %v354, %v505
    %v565 = vsub.f32 %v355, %v509
    %v566 = vsub.f32 %v356, %v513
    %v567 = vsub.f32 %v357, %v517
    %v568 = vsub.f32 %v358, %v521
    %v569 = vsub.f32 %v359, %v525
    %v570 = vsub.f32 %v360, %v529
    %v571 = vsub.f32 %v361, %v533
    %v572 = vsub.f32 %v362, %v537
    %v573 = vsub.f32 %v363, %v541
    %v574 = vmul.f32 %v558, 1.442695
    %v575 = vpow.pop %v574
    %v576 = vmul.f32 %v559, 1.442695
    %v577 = vpow.pop %v576
    %v578 = vmul.f32 %v560, 1.442695
    %v579 = vpow.pop %v578
    %v580 = vmul.f32 %v561, 1.442695
    %v581 = vpow.pop %v580
    %v582 = vmul.f32 %v562, 1.442695
    %v583 = vpow.pop %v582
    %v584 = vmul.f32 %v563, 1.442695
    %v585 = vpow.pop %v584
    %v586 = vmul.f32 %v564, 1.442695
    %v587 = vpow.pop %v586
    %v588 = vmul.f32 %v565, 1.442695
    %v589 = vpow.pop %v588
    %v590 = vmul.f32 %v566, 1.442695
    %v591 = vpow.pop %v590
    %v592 = vmul.f32 %v567, 1.442695
    %v593 = vpow.pop %v592
    %v594 = vmul.f32 %v568, 1.442695
    %v595 = vpow.pop %v594
    %v596 = vmul.f32 %v569, 1.442695
    %v597 = vpow.pop %v596
    %v598 = vmul.f32 %v570, 1.442695
    %v599 = vpow.pop %v598
    %v600 = vmul.f32 %v571, 1.442695
    %v601 = vpow.pop %v600
    %v602 = vmul.f32 %v572, 1.442695
    %v603 = vpow.pop %v602
    %v604 = vmul.f32 %v573, 1.442695
    %v605 = vpow.pop %v604
    %622 = vset.pattern.permute.xlu0 0
    %623 = vperm.xlu0 %622, %v575
    %v624 = vpop.permute.xlu0 %623
    %625 = vset.pattern.permute.xlu0 0
    %626 = vperm.xlu0 %625, %v577
    %v627 = vpop.permute.xlu0 %626
    %628 = vset.pattern.permute.xlu0 0
    %629 = vperm.xlu0 %628, %v579
    %v630 = vpop.permute.xlu0 %629
    %631 = vset.pattern.permute.xlu0 0
    %632 = vperm.xlu0 %631, %v581
    %v633 = vpop.permute.xlu0 %632
    %634 = vset.pattern.permute.xlu0 0
    %635 = vperm.xlu0 %634, %v583
    %v636 = vpop.permute.xlu0 %635
    %637 = vset.pattern.permute.xlu0 0
    %638 = vperm.xlu0 %637, %v585
    %v639 = vpop.permute.xlu0 %638
    %640 = vset.pattern.permute.xlu0 0
    %641 = vperm.xlu0 %640, %v587
    %v642 = vpop.permute.xlu0 %641
    %643 = vset.pattern.permute.xlu0 0
    %644 = vperm.xlu0 %643, %v589
    %v645 = vpop.permute.xlu0 %644
    %646 = vset.pattern.permute.xlu0 0
    %647 = vperm.xlu0 %646, %v591
    %v648 = vpop.permute.xlu0 %647
    %649 = vset.pattern.permute.xlu0 0
    %650 = vperm.xlu0 %649, %v593
    %v651 = vpop.permute.xlu0 %650
    %652 = vset.pattern.permute.xlu0 0
    %653 = vperm.xlu0 %652, %v595
    %v654 = vpop.permute.xlu0 %653
    %655 = vset.pattern.permute.xlu0 0
    %656 = vperm.xlu0 %655, %v597
    %v657 = vpop.permute.xlu0 %656
    %658 = vset.pattern.permute.xlu0 0
    %659 = vperm.xlu0 %658, %v599
    %v660 = vpop.permute.xlu0 %659
    %661 = vset.pattern.permute.xlu0 0
    %662 = vperm.xlu0 %661, %v601
    %v663 = vpop.permute.xlu0 %662
    %664 = vset.pattern.permute.xlu0 0
    %665 = vperm.xlu0 %664, %v603
    %v666 = vpop.permute.xlu0 %665
    %667 = vset.pattern.permute.xlu0 0
    %668 = vperm.xlu0 %667, %v605
    %v669 = vpop.permute.xlu0 %668
    %v670 = vlaneseq
    %v671 = vshrl.u32 %v670, 7
    %v672 = vsub.s32 %v381, %v671
    %v673 = vrot.slane %v624, %v672
    %v674 = vlaneseq
    %v675 = vshrl.u32 %v674, 7
    %v676 = vsub.s32 %v381, %v675
    %v677 = vrot.slane %v627, %v676
    %v678 = vlaneseq
    %v679 = vshrl.u32 %v678, 7
    %v680 = vsub.s32 %v381, %v679
    %v681 = vrot.slane %v630, %v680
    %v682 = vlaneseq
    %v683 = vshrl.u32 %v682, 7
    %v684 = vsub.s32 %v381, %v683
    %v685 = vrot.slane %v633, %v684
    %v686 = vlaneseq
    %v687 = vshrl.u32 %v686, 7
    %v688 = vsub.s32 %v381, %v687
    %v689 = vrot.slane %v636, %v688
    %v690 = vlaneseq
    %v691 = vshrl.u32 %v690, 7
    %v692 = vsub.s32 %v381, %v691
    %v693 = vrot.slane %v639, %v692
    %v694 = vlaneseq
    %v695 = vshrl.u32 %v694, 7
    %v696 = vsub.s32 %v381, %v695
    %v697 = vrot.slane %v642, %v696
    %v698 = vlaneseq
    %v699 = vshrl.u32 %v698, 7
    %v700 = vsub.s32 %v381, %v699
    %v701 = vrot.slane %v645, %v700
    %v702 = vlaneseq
    %v703 = vshrl.u32 %v702, 7
    %v704 = vsub.s32 %v381, %v703
    %v705 = vrot.slane %v648, %v704
    %v706 = vlaneseq
    %v707 = vshrl.u32 %v706, 7
    %v708 = vsub.s32 %v381, %v707
    %v709 = vrot.slane %v651, %v708
    %v710 = vlaneseq
    %v711 = vshrl.u32 %v710, 7
    %v712 = vsub.s32 %v381, %v711
    %v713 = vrot.slane %v654, %v712
    %v714 = vlaneseq
    %v715 = vshrl.u32 %v714, 7
    %v716 = vsub.s32 %v381, %v715
    %v717 = vrot.slane %v657, %v716
    %v718 = vlaneseq
    %v719 = vshrl.u32 %v718, 7
    %v720 = vsub.s32 %v381, %v719
    %v721 = vrot.slane %v660, %v720
    %v722 = vlaneseq
    %v723 = vshrl.u32 %v722, 7
    %v724 = vsub.s32 %v381, %v723
    %v725 = vrot.slane %v663, %v724
    %v726 = vlaneseq
    %v727 = vshrl.u32 %v726, 7
    %v728 = vsub.s32 %v381, %v727
    %v729 = vrot.slane %v666, %v728
    %v730 = vlaneseq
    %v731 = vshrl.u32 %v730, 7
    %v732 = vsub.s32 %v381, %v731
    %v733 = vrot.slane %v669, %v732
    %v734 = vsel %vm446, %v677, %v673
    %v735 = vsel %vm448, %v681, %v734
    %v736 = vsel %vm450, %v685, %v735
    %v737 = vsel %vm452, %v689, %v736
    %v738 = vsel %vm454, %v693, %v737
    %v739 = vsel %vm456, %v697, %v738
    %v740 = vsel %vm458, %v701, %v739
    %v741 = vsel %vm446, %v709, %v705
    %v742 = vsel %vm448, %v713, %v741
    %v743 = vsel %vm450, %v717, %v742
    %v744 = vsel %vm452, %v721, %v743
    %v745 = vsel %vm454, %v725, %v744
    %v746 = vsel %vm456, %v729, %v745
    %v747 = vsel %vm458, %v733, %v746
    %v750 = vsel %vm469, %v740, 0.0
    %751 = vadd.xlane.f32.xlu0 %v750
    %v752 = vpop.xlane.xlu0 %751
    %v753 = vsel %vm469, %v747, 0.0
    %754 = vadd.xlane.f32.xlu0 %v753
    %v755 = vpop.xlane.xlu0 %754
    %v772 = vmul.f32 %v30, %v624
    %v773 = vmul.f32 %v31, %v624
    %v774 = vmul.f32 %v32, %v624
    %v775 = vmul.f32 %v33, %v624
    %v776 = vmul.f32 %v34, %v624
    %v777 = vmul.f32 %v35, %v627
    %v778 = vmul.f32 %v36, %v627
    %v779 = vmul.f32 %v37, %v627
    %v780 = vmul.f32 %v38, %v627
    %v781 = vmul.f32 %v39, %v627
    %v782 = vmul.f32 %v40, %v630
    %v783 = vmul.f32 %v41, %v630
    %v784 = vmul.f32 %v42, %v630
    %v785 = vmul.f32 %v43, %v630
    %v786 = vmul.f32 %v44, %v630
    %v787 = vmul.f32 %v45, %v633
    %v788 = vmul.f32 %v46, %v633
    %v789 = vmul.f32 %v47, %v633
    %v790 = vmul.f32 %v48, %v633
    %v791 = vmul.f32 %v49, %v633
    %v792 = vmul.f32 %v50, %v636
    %v793 = vmul.f32 %v51, %v636
    %v794 = vmul.f32 %v52, %v636
    %v795 = vmul.f32 %v53, %v636
    %v796 = vmul.f32 %v54, %v636
    %v797 = vmul.f32 %v55, %v639
    %v798 = vmul.f32 %v56, %v639
    %v799 = vmul.f32 %v57, %v639
    %v800 = vmul.f32 %v58, %v639
    %v801 = vmul.f32 %v59, %v639
    %v802 = vmul.f32 %v60, %v642
    %v803 = vmul.f32 %v61, %v642
    %v804 = vmul.f32 %v62, %v642
    %v805 = vmul.f32 %v63, %v642
    %v806 = vmul.f32 %v64, %v642
    %v807 = vmul.f32 %v65, %v645
    %v808 = vmul.f32 %v66, %v645
    %v809 = vmul.f32 %v67, %v645
    %v810 = vmul.f32 %v68, %v645
    %v811 = vmul.f32 %v69, %v645
    %v812 = vmul.f32 %v70, %v648
    %v813 = vmul.f32 %v71, %v648
    %v814 = vmul.f32 %v72, %v648
    %v815 = vmul.f32 %v73, %v648
    %v816 = vmul.f32 %v74, %v648
    %v817 = vmul.f32 %v75, %v651
    %v818 = vmul.f32 %v76, %v651
    %v819 = vmul.f32 %v77, %v651
    %v820 = vmul.f32 %v78, %v651
    %v821 = vmul.f32 %v79, %v651
    %v822 = vmul.f32 %v80, %v654
    %v823 = vmul.f32 %v81, %v654
    %v824 = vmul.f32 %v82, %v654
    %v825 = vmul.f32 %v83, %v654
    %v826 = vmul.f32 %v84, %v654
    %v827 = vmul.f32 %v85, %v657
    %v828 = vmul.f32 %v86, %v657
    %v829 = vmul.f32 %v87, %v657
    %v830 = vmul.f32 %v88, %v657
    %v831 = vmul.f32 %v89, %v657
    %v832 = vmul.f32 %v90, %v660
    %v833 = vmul.f32 %v91, %v660
    %v834 = vmul.f32 %v92, %v660
    %v835 = vmul.f32 %v93, %v660
    %v836 = vmul.f32 %v94, %v660
    %v837 = vmul.f32 %v95, %v663
    %v838 = vmul.f32 %v96, %v663
    %v839 = vmul.f32 %v97, %v663
    %v840 = vmul.f32 %v98, %v663
    %v841 = vmul.f32 %v99, %v663
    %v842 = vmul.f32 %v100, %v666
    %v843 = vmul.f32 %v101, %v666
    %v844 = vmul.f32 %v102, %v666
    %v845 = vmul.f32 %v103, %v666
    %v846 = vmul.f32 %v104, %v666
    %v847 = vmul.f32 %v105, %v669
    %v848 = vmul.f32 %v106, %v669
    %v849 = vmul.f32 %v107, %v669
    %v850 = vmul.f32 %v108, %v669
    %v851 = vmul.f32 %v109, %v669
    %v852 = vrot.slane %v772, 4
    %v853 = vadd.f32 %v772, %v852
    %v854 = vrot.slane %v853, 2
    %v855 = vadd.f32 %v853, %v854
    %v856 = vrot.slane %v855, 1
    %v857 = vadd.f32 %v855, %v856
    %v858 = vrot.slane %v773, 4
    %v859 = vadd.f32 %v773, %v858
    %v860 = vrot.slane %v859, 2
    %v861 = vadd.f32 %v859, %v860
    %v862 = vrot.slane %v861, 1
    %v863 = vadd.f32 %v861, %v862
    %v864 = vrot.slane %v774, 4
    %v865 = vadd.f32 %v774, %v864
    %v866 = vrot.slane %v865, 2
    %v867 = vadd.f32 %v865, %v866
    %v868 = vrot.slane %v867, 1
    %v869 = vadd.f32 %v867, %v868
    %v870 = vrot.slane %v775, 4
    %v871 = vadd.f32 %v775, %v870
    %v872 = vrot.slane %v871, 2
    %v873 = vadd.f32 %v871, %v872
    %v874 = vrot.slane %v873, 1
    %v875 = vadd.f32 %v873, %v874
    %v876 = vsel %vm221, %v776, 0.0
    %v877 = vrot.slane %v876, 4
    %v878 = vadd.f32 %v876, %v877
    %v879 = vrot.slane %v878, 2
    %v880 = vadd.f32 %v878, %v879
    %v881 = vrot.slane %v880, 1
    %v882 = vadd.f32 %v880, %v881
    %v883 = vrot.slane %v777, 4
    %v884 = vadd.f32 %v777, %v883
    %v885 = vrot.slane %v884, 2
    %v886 = vadd.f32 %v884, %v885
    %v887 = vrot.slane %v886, 1
    %v888 = vadd.f32 %v886, %v887
    %v889 = vrot.slane %v778, 4
    %v890 = vadd.f32 %v778, %v889
    %v891 = vrot.slane %v890, 2
    %v892 = vadd.f32 %v890, %v891
    %v893 = vrot.slane %v892, 1
    %v894 = vadd.f32 %v892, %v893
    %v895 = vrot.slane %v779, 4
    %v896 = vadd.f32 %v779, %v895
    %v897 = vrot.slane %v896, 2
    %v898 = vadd.f32 %v896, %v897
    %v899 = vrot.slane %v898, 1
    %v900 = vadd.f32 %v898, %v899
    %v901 = vrot.slane %v780, 4
    %v902 = vadd.f32 %v780, %v901
    %v903 = vrot.slane %v902, 2
    %v904 = vadd.f32 %v902, %v903
    %v905 = vrot.slane %v904, 1
    %v906 = vadd.f32 %v904, %v905
    %v907 = vsel %vm221, %v781, 0.0
    %v908 = vrot.slane %v907, 4
    %v909 = vadd.f32 %v907, %v908
    %v910 = vrot.slane %v909, 2
    %v911 = vadd.f32 %v909, %v910
    %v912 = vrot.slane %v911, 1
    %v913 = vadd.f32 %v911, %v912
    %v914 = vrot.slane %v782, 4
    %v915 = vadd.f32 %v782, %v914
    %v916 = vrot.slane %v915, 2
    %v917 = vadd.f32 %v915, %v916
    %v918 = vrot.slane %v917, 1
    %v919 = vadd.f32 %v917, %v918
    %v920 = vrot.slane %v783, 4
    %v921 = vadd.f32 %v783, %v920
    %v922 = vrot.slane %v921, 2
    %v923 = vadd.f32 %v921, %v922
    %v924 = vrot.slane %v923, 1
    %v925 = vadd.f32 %v923, %v924
    %v926 = vrot.slane %v784, 4
    %v927 = vadd.f32 %v784, %v926
    %v928 = vrot.slane %v927, 2
    %v929 = vadd.f32 %v927, %v928
    %v930 = vrot.slane %v929, 1
    %v931 = vadd.f32 %v929, %v930
    %v932 = vrot.slane %v785, 4
    %v933 = vadd.f32 %v785, %v932
    %v934 = vrot.slane %v933, 2
    %v935 = vadd.f32 %v933, %v934
    %v936 = vrot.slane %v935, 1
    %v937 = vadd.f32 %v935, %v936
    %v938 = vsel %vm221, %v786, 0.0
    %v939 = vrot.slane %v938, 4
    %v940 = vadd.f32 %v938, %v939
    %v941 = vrot.slane %v940, 2
    %v942 = vadd.f32 %v940, %v941
    %v943 = vrot.slane %v942, 1
    %v944 = vadd.f32 %v942, %v943
    %v945 = vrot.slane %v787, 4
    %v946 = vadd.f32 %v787, %v945
    %v947 = vrot.slane %v946, 2
    %v948 = vadd.f32 %v946, %v947
    %v949 = vrot.slane %v948, 1
    %v950 = vadd.f32 %v948, %v949
    %v951 = vrot.slane %v788, 4
    %v952 = vadd.f32 %v788, %v951
    %v953 = vrot.slane %v952, 2
    %v954 = vadd.f32 %v952, %v953
    %v955 = vrot.slane %v954, 1
    %v956 = vadd.f32 %v954, %v955
    %v957 = vrot.slane %v789, 4
    %v958 = vadd.f32 %v789, %v957
    %v959 = vrot.slane %v958, 2
    %v960 = vadd.f32 %v958, %v959
    %v961 = vrot.slane %v960, 1
    %v962 = vadd.f32 %v960, %v961
    %v963 = vrot.slane %v790, 4
    %v964 = vadd.f32 %v790, %v963
    %v965 = vrot.slane %v964, 2
    %v966 = vadd.f32 %v964, %v965
    %v967 = vrot.slane %v966, 1
    %v968 = vadd.f32 %v966, %v967
    %v969 = vsel %vm221, %v791, 0.0
    %v970 = vrot.slane %v969, 4
    %v971 = vadd.f32 %v969, %v970
    %v972 = vrot.slane %v971, 2
    %v973 = vadd.f32 %v971, %v972
    %v974 = vrot.slane %v973, 1
    %v975 = vadd.f32 %v973, %v974
    %v976 = vrot.slane %v792, 4
    %v977 = vadd.f32 %v792, %v976
    %v978 = vrot.slane %v977, 2
    %v979 = vadd.f32 %v977, %v978
    %v980 = vrot.slane %v979, 1
    %v981 = vadd.f32 %v979, %v980
    %v982 = vrot.slane %v793, 4
    %v983 = vadd.f32 %v793, %v982
    %v984 = vrot.slane %v983, 2
    %v985 = vadd.f32 %v983, %v984
    %v986 = vrot.slane %v985, 1
    %v987 = vadd.f32 %v985, %v986
    %v988 = vrot.slane %v794, 4
    %v989 = vadd.f32 %v794, %v988
    %v990 = vrot.slane %v989, 2
    %v991 = vadd.f32 %v989, %v990
    %v992 = vrot.slane %v991, 1
    %v993 = vadd.f32 %v991, %v992
    %v994 = vrot.slane %v795, 4
    %v995 = vadd.f32 %v795, %v994
    %v996 = vrot.slane %v995, 2
    %v997 = vadd.f32 %v995, %v996
    %v998 = vrot.slane %v997, 1
    %v999 = vadd.f32 %v997, %v998
    %v1000 = vsel %vm221, %v796, 0.0
    %v1001 = vrot.slane %v1000, 4
    %v1002 = vadd.f32 %v1000, %v1001
    %v1003 = vrot.slane %v1002, 2
    %v1004 = vadd.f32 %v1002, %v1003
    %v1005 = vrot.slane %v1004, 1
    %v1006 = vadd.f32 %v1004, %v1005
    %v1007 = vrot.slane %v797, 4
    %v1008 = vadd.f32 %v797, %v1007
    %v1009 = vrot.slane %v1008, 2
    %v1010 = vadd.f32 %v1008, %v1009
    %v1011 = vrot.slane %v1010, 1
    %v1012 = vadd.f32 %v1010, %v1011
    %v1013 = vrot.slane %v798, 4
    %v1014 = vadd.f32 %v798, %v1013
    %v1015 = vrot.slane %v1014, 2
    %v1016 = vadd.f32 %v1014, %v1015
    %v1017 = vrot.slane %v1016, 1
    %v1018 = vadd.f32 %v1016, %v1017
    %v1019 = vrot.slane %v799, 4
    %v1020 = vadd.f32 %v799, %v1019
    %v1021 = vrot.slane %v1020, 2
    %v1022 = vadd.f32 %v1020, %v1021
    %v1023 = vrot.slane %v1022, 1
    %v1024 = vadd.f32 %v1022, %v1023
    %v1025 = vrot.slane %v800, 4
    %v1026 = vadd.f32 %v800, %v1025
    %v1027 = vrot.slane %v1026, 2
    %v1028 = vadd.f32 %v1026, %v1027
    %v1029 = vrot.slane %v1028, 1
    %v1030 = vadd.f32 %v1028, %v1029
    %v1031 = vsel %vm221, %v801, 0.0
    %v1032 = vrot.slane %v1031, 4
    %v1033 = vadd.f32 %v1031, %v1032
    %v1034 = vrot.slane %v1033, 2
    %v1035 = vadd.f32 %v1033, %v1034
    %v1036 = vrot.slane %v1035, 1
    %v1037 = vadd.f32 %v1035, %v1036
    %v1038 = vrot.slane %v802, 4
    %v1039 = vadd.f32 %v802, %v1038
    %v1040 = vrot.slane %v1039, 2
    %v1041 = vadd.f32 %v1039, %v1040
    %v1042 = vrot.slane %v1041, 1
    %v1043 = vadd.f32 %v1041, %v1042
    %v1044 = vrot.slane %v803, 4
    %v1045 = vadd.f32 %v803, %v1044
    %v1046 = vrot.slane %v1045, 2
    %v1047 = vadd.f32 %v1045, %v1046
    %v1048 = vrot.slane %v1047, 1
    %v1049 = vadd.f32 %v1047, %v1048
    %v1050 = vrot.slane %v804, 4
    %v1051 = vadd.f32 %v804, %v1050
    %v1052 = vrot.slane %v1051, 2
    %v1053 = vadd.f32 %v1051, %v1052
    %v1054 = vrot.slane %v1053, 1
    %v1055 = vadd.f32 %v1053, %v1054
    %v1056 = vrot.slane %v805, 4
    %v1057 = vadd.f32 %v805, %v1056
    %v1058 = vrot.slane %v1057, 2
    %v1059 = vadd.f32 %v1057, %v1058
    %v1060 = vrot.slane %v1059, 1
    %v1061 = vadd.f32 %v1059, %v1060
    %v1062 = vsel %vm221, %v806, 0.0
    %v1063 = vrot.slane %v1062, 4
    %v1064 = vadd.f32 %v1062, %v1063
    %v1065 = vrot.slane %v1064, 2
    %v1066 = vadd.f32 %v1064, %v1065
    %v1067 = vrot.slane %v1066, 1
    %v1068 = vadd.f32 %v1066, %v1067
    %v1069 = vrot.slane %v807, 4
    %v1070 = vadd.f32 %v807, %v1069
    %v1071 = vrot.slane %v1070, 2
    %v1072 = vadd.f32 %v1070, %v1071
    %v1073 = vrot.slane %v1072, 1
    %v1074 = vadd.f32 %v1072, %v1073
    %v1075 = vrot.slane %v808, 4
    %v1076 = vadd.f32 %v808, %v1075
    %v1077 = vrot.slane %v1076, 2
    %v1078 = vadd.f32 %v1076, %v1077
    %v1079 = vrot.slane %v1078, 1
    %v1080 = vadd.f32 %v1078, %v1079
    %v1081 = vrot.slane %v809, 4
    %v1082 = vadd.f32 %v809, %v1081
    %v1083 = vrot.slane %v1082, 2
    %v1084 = vadd.f32 %v1082, %v1083
    %v1085 = vrot.slane %v1084, 1
    %v1086 = vadd.f32 %v1084, %v1085
    %v1087 = vrot.slane %v810, 4
    %v1088 = vadd.f32 %v810, %v1087
    %v1089 = vrot.slane %v1088, 2
    %v1090 = vadd.f32 %v1088, %v1089
    %v1091 = vrot.slane %v1090, 1
    %v1092 = vadd.f32 %v1090, %v1091
    %v1093 = vsel %vm221, %v811, 0.0
    %v1094 = vrot.slane %v1093, 4
    %v1095 = vadd.f32 %v1093, %v1094
    %v1096 = vrot.slane %v1095, 2
    %v1097 = vadd.f32 %v1095, %v1096
    %v1098 = vrot.slane %v1097, 1
    %v1099 = vadd.f32 %v1097, %v1098
    %v1100 = vrot.slane %v812, 4
    %v1101 = vadd.f32 %v812, %v1100
    %v1102 = vrot.slane %v1101, 2
    %v1103 = vadd.f32 %v1101, %v1102
    %v1104 = vrot.slane %v1103, 1
    %v1105 = vadd.f32 %v1103, %v1104
    %v1106 = vrot.slane %v813, 4
    %v1107 = vadd.f32 %v813, %v1106
    %v1108 = vrot.slane %v1107, 2
    %v1109 = vadd.f32 %v1107, %v1108
    %v1110 = vrot.slane %v1109, 1
    %v1111 = vadd.f32 %v1109, %v1110
    %v1112 = vrot.slane %v814, 4
    %v1113 = vadd.f32 %v814, %v1112
    %v1114 = vrot.slane %v1113, 2
    %v1115 = vadd.f32 %v1113, %v1114
    %v1116 = vrot.slane %v1115, 1
    %v1117 = vadd.f32 %v1115, %v1116
    %v1118 = vrot.slane %v815, 4
    %v1119 = vadd.f32 %v815, %v1118
    %v1120 = vrot.slane %v1119, 2
    %v1121 = vadd.f32 %v1119, %v1120
    %v1122 = vrot.slane %v1121, 1
    %v1123 = vadd.f32 %v1121, %v1122
    %v1124 = vsel %vm221, %v816, 0.0
    %v1125 = vrot.slane %v1124, 4
    %v1126 = vadd.f32 %v1124, %v1125
    %v1127 = vrot.slane %v1126, 2
    %v1128 = vadd.f32 %v1126, %v1127
    %v1129 = vrot.slane %v1128, 1
    %v1130 = vadd.f32 %v1128, %v1129
    %v1131 = vrot.slane %v817, 4
    %v1132 = vadd.f32 %v817, %v1131
    %v1133 = vrot.slane %v1132, 2
    %v1134 = vadd.f32 %v1132, %v1133
    %v1135 = vrot.slane %v1134, 1
    %v1136 = vadd.f32 %v1134, %v1135
    %v1137 = vrot.slane %v818, 4
    %v1138 = vadd.f32 %v818, %v1137
    %v1139 = vrot.slane %v1138, 2
    %v1140 = vadd.f32 %v1138, %v1139
    %v1141 = vrot.slane %v1140, 1
    %v1142 = vadd.f32 %v1140, %v1141
    %v1143 = vrot.slane %v819, 4
    %v1144 = vadd.f32 %v819, %v1143
    %v1145 = vrot.slane %v1144, 2
    %v1146 = vadd.f32 %v1144, %v1145
    %v1147 = vrot.slane %v1146, 1
    %v1148 = vadd.f32 %v1146, %v1147
    %v1149 = vrot.slane %v820, 4
    %v1150 = vadd.f32 %v820, %v1149
    %v1151 = vrot.slane %v1150, 2
    %v1152 = vadd.f32 %v1150, %v1151
    %v1153 = vrot.slane %v1152, 1
    %v1154 = vadd.f32 %v1152, %v1153
    %v1155 = vsel %vm221, %v821, 0.0
    %v1156 = vrot.slane %v1155, 4
    %v1157 = vadd.f32 %v1155, %v1156
    %v1158 = vrot.slane %v1157, 2
    %v1159 = vadd.f32 %v1157, %v1158
    %v1160 = vrot.slane %v1159, 1
    %v1161 = vadd.f32 %v1159, %v1160
    %v1162 = vrot.slane %v822, 4
    %v1163 = vadd.f32 %v822, %v1162
    %v1164 = vrot.slane %v1163, 2
    %v1165 = vadd.f32 %v1163, %v1164
    %v1166 = vrot.slane %v1165, 1
    %v1167 = vadd.f32 %v1165, %v1166
    %v1168 = vrot.slane %v823, 4
    %v1169 = vadd.f32 %v823, %v1168
    %v1170 = vrot.slane %v1169, 2
    %v1171 = vadd.f32 %v1169, %v1170
    %v1172 = vrot.slane %v1171, 1
    %v1173 = vadd.f32 %v1171, %v1172
    %v1174 = vrot.slane %v824, 4
    %v1175 = vadd.f32 %v824, %v1174
    %v1176 = vrot.slane %v1175, 2
    %v1177 = vadd.f32 %v1175, %v1176
    %v1178 = vrot.slane %v1177, 1
    %v1179 = vadd.f32 %v1177, %v1178
    %v1180 = vrot.slane %v825, 4
    %v1181 = vadd.f32 %v825, %v1180
    %v1182 = vrot.slane %v1181, 2
    %v1183 = vadd.f32 %v1181, %v1182
    %v1184 = vrot.slane %v1183, 1
    %v1185 = vadd.f32 %v1183, %v1184
    %v1186 = vsel %vm221, %v826, 0.0
    %v1187 = vrot.slane %v1186, 4
    %v1188 = vadd.f32 %v1186, %v1187
    %v1189 = vrot.slane %v1188, 2
    %v1190 = vadd.f32 %v1188, %v1189
    %v1191 = vrot.slane %v1190, 1
    %v1192 = vadd.f32 %v1190, %v1191
    %v1193 = vrot.slane %v827, 4
    %v1194 = vadd.f32 %v827, %v1193
    %v1195 = vrot.slane %v1194, 2
    %v1196 = vadd.f32 %v1194, %v1195
    %v1197 = vrot.slane %v1196, 1
    %v1198 = vadd.f32 %v1196, %v1197
    %v1199 = vrot.slane %v828, 4
    %v1200 = vadd.f32 %v828, %v1199
    %v1201 = vrot.slane %v1200, 2
    %v1202 = vadd.f32 %v1200, %v1201
    %v1203 = vrot.slane %v1202, 1
    %v1204 = vadd.f32 %v1202, %v1203
    %v1205 = vrot.slane %v829, 4
    %v1206 = vadd.f32 %v829, %v1205
    %v1207 = vrot.slane %v1206, 2
    %v1208 = vadd.f32 %v1206, %v1207
    %v1209 = vrot.slane %v1208, 1
    %v1210 = vadd.f32 %v1208, %v1209
    %v1211 = vrot.slane %v830, 4
    %v1212 = vadd.f32 %v830, %v1211
    %v1213 = vrot.slane %v1212, 2
    %v1214 = vadd.f32 %v1212, %v1213
    %v1215 = vrot.slane %v1214, 1
    %v1216 = vadd.f32 %v1214, %v1215
    %v1217 = vsel %vm221, %v831, 0.0
    %v1218 = vrot.slane %v1217, 4
    %v1219 = vadd.f32 %v1217, %v1218
    %v1220 = vrot.slane %v1219, 2
    %v1221 = vadd.f32 %v1219, %v1220
    %v1222 = vrot.slane %v1221, 1
    %v1223 = vadd.f32 %v1221, %v1222
    %v1224 = vrot.slane %v832, 4
    %v1225 = vadd.f32 %v832, %v1224
    %v1226 = vrot.slane %v1225, 2
    %v1227 = vadd.f32 %v1225, %v1226
    %v1228 = vrot.slane %v1227, 1
    %v1229 = vadd.f32 %v1227, %v1228
    %v1230 = vrot.slane %v833, 4
    %v1231 = vadd.f32 %v833, %v1230
    %v1232 = vrot.slane %v1231, 2
    %v1233 = vadd.f32 %v1231, %v1232
    %v1234 = vrot.slane %v1233, 1
    %v1235 = vadd.f32 %v1233, %v1234
    %v1236 = vrot.slane %v834, 4
    %v1237 = vadd.f32 %v834, %v1236
    %v1238 = vrot.slane %v1237, 2
    %v1239 = vadd.f32 %v1237, %v1238
    %v1240 = vrot.slane %v1239, 1
    %v1241 = vadd.f32 %v1239, %v1240
    %v1242 = vrot.slane %v835, 4
    %v1243 = vadd.f32 %v835, %v1242
    %v1244 = vrot.slane %v1243, 2
    %v1245 = vadd.f32 %v1243, %v1244
    %v1246 = vrot.slane %v1245, 1
    %v1247 = vadd.f32 %v1245, %v1246
    %v1248 = vsel %vm221, %v836, 0.0
    %v1249 = vrot.slane %v1248, 4
    %v1250 = vadd.f32 %v1248, %v1249
    %v1251 = vrot.slane %v1250, 2
    %v1252 = vadd.f32 %v1250, %v1251
    %v1253 = vrot.slane %v1252, 1
    %v1254 = vadd.f32 %v1252, %v1253
    %v1255 = vrot.slane %v837, 4
    %v1256 = vadd.f32 %v837, %v1255
    %v1257 = vrot.slane %v1256, 2
    %v1258 = vadd.f32 %v1256, %v1257
    %v1259 = vrot.slane %v1258, 1
    %v1260 = vadd.f32 %v1258, %v1259
    %v1261 = vrot.slane %v838, 4
    %v1262 = vadd.f32 %v838, %v1261
    %v1263 = vrot.slane %v1262, 2
    %v1264 = vadd.f32 %v1262, %v1263
    %v1265 = vrot.slane %v1264, 1
    %v1266 = vadd.f32 %v1264, %v1265
    %v1267 = vrot.slane %v839, 4
    %v1268 = vadd.f32 %v839, %v1267
    %v1269 = vrot.slane %v1268, 2
    %v1270 = vadd.f32 %v1268, %v1269
    %v1271 = vrot.slane %v1270, 1
    %v1272 = vadd.f32 %v1270, %v1271
    %v1273 = vrot.slane %v840, 4
    %v1274 = vadd.f32 %v840, %v1273
    %v1275 = vrot.slane %v1274, 2
    %v1276 = vadd.f32 %v1274, %v1275
    %v1277 = vrot.slane %v1276, 1
    %v1278 = vadd.f32 %v1276, %v1277
    %v1279 = vsel %vm221, %v841, 0.0
    %v1280 = vrot.slane %v1279, 4
    %v1281 = vadd.f32 %v1279, %v1280
    %v1282 = vrot.slane %v1281, 2
    %v1283 = vadd.f32 %v1281, %v1282
    %v1284 = vrot.slane %v1283, 1
    %v1285 = vadd.f32 %v1283, %v1284
    %v1286 = vrot.slane %v842, 4
    %v1287 = vadd.f32 %v842, %v1286
    %v1288 = vrot.slane %v1287, 2
    %v1289 = vadd.f32 %v1287, %v1288
    %v1290 = vrot.slane %v1289, 1
    %v1291 = vadd.f32 %v1289, %v1290
    %v1292 = vrot.slane %v843, 4
    %v1293 = vadd.f32 %v843, %v1292
    %v1294 = vrot.slane %v1293, 2
    %v1295 = vadd.f32 %v1293, %v1294
    %v1296 = vrot.slane %v1295, 1
    %v1297 = vadd.f32 %v1295, %v1296
    %v1298 = vrot.slane %v844, 4
    %v1299 = vadd.f32 %v844, %v1298
    %v1300 = vrot.slane %v1299, 2
    %v1301 = vadd.f32 %v1299, %v1300
    %v1302 = vrot.slane %v1301, 1
    %v1303 = vadd.f32 %v1301, %v1302
    %v1304 = vrot.slane %v845, 4
    %v1305 = vadd.f32 %v845, %v1304
    %v1306 = vrot.slane %v1305, 2
    %v1307 = vadd.f32 %v1305, %v1306
    %v1308 = vrot.slane %v1307, 1
    %v1309 = vadd.f32 %v1307, %v1308
    %v1310 = vsel %vm221, %v846, 0.0
    %v1311 = vrot.slane %v1310, 4
    %v1312 = vadd.f32 %v1310, %v1311
    %v1313 = vrot.slane %v1312, 2
    %v1314 = vadd.f32 %v1312, %v1313
    %v1315 = vrot.slane %v1314, 1
    %v1316 = vadd.f32 %v1314, %v1315
    %v1317 = vrot.slane %v847, 4
    %v1318 = vadd.f32 %v847, %v1317
    %v1319 = vrot.slane %v1318, 2
    %v1320 = vadd.f32 %v1318, %v1319
    %v1321 = vrot.slane %v1320, 1
    %v1322 = vadd.f32 %v1320, %v1321
    %v1323 = vrot.slane %v848, 4
    %v1324 = vadd.f32 %v848, %v1323
    %v1325 = vrot.slane %v1324, 2
    %v1326 = vadd.f32 %v1324, %v1325
    %v1327 = vrot.slane %v1326, 1
    %v1328 = vadd.f32 %v1326, %v1327
    %v1329 = vrot.slane %v849, 4
    %v1330 = vadd.f32 %v849, %v1329
    %v1331 = vrot.slane %v1330, 2
    %v1332 = vadd.f32 %v1330, %v1331
    %v1333 = vrot.slane %v1332, 1
    %v1334 = vadd.f32 %v1332, %v1333
    %v1335 = vrot.slane %v850, 4
    %v1336 = vadd.f32 %v850, %v1335
    %v1337 = vrot.slane %v1336, 2
    %v1338 = vadd.f32 %v1336, %v1337
    %v1339 = vrot.slane %v1338, 1
    %v1340 = vadd.f32 %v1338, %v1339
    %v1341 = vsel %vm221, %v851, 0.0
    %v1342 = vrot.slane %v1341, 4
    %v1343 = vadd.f32 %v1341, %v1342
    %v1344 = vrot.slane %v1343, 2
    %v1345 = vadd.f32 %v1343, %v1344
    %v1346 = vrot.slane %v1345, 1
    %v1347 = vadd.f32 %v1345, %v1346
    %v1348 = vrcp.pop %v752
    %v1349 = vrcp.pop %v755
    %v1352 = vrot.slane %v1348, 1
    %v1353 = vrot.slane %v1348, 2
    %v1354 = vrot.slane %v1348, 3
    %v1355 = vrot.slane %v1348, 4
    %v1356 = vrot.slane %v1348, 5
    %v1357 = vrot.slane %v1348, 6
    %v1358 = vrot.slane %v1348, 7
    %v1359 = vrot.slane %v1349, 1
    %v1360 = vrot.slane %v1349, 2
    %v1361 = vrot.slane %v1349, 3
    %v1362 = vrot.slane %v1349, 4
    %v1363 = vrot.slane %v1349, 5
    %v1364 = vrot.slane %v1349, 6
    %v1365 = vrot.slane %v1349, 7
    %v1382 = vmul.f32 %v857, %v1348
    %v1383 = vmul.f32 %v863, %v1348
    %v1384 = vmul.f32 %v869, %v1348
    %v1385 = vmul.f32 %v875, %v1348
    %v1386 = vmul.f32 %v882, %v1348
    %v1387 = vmul.f32 %v888, %v1352
    %v1388 = vmul.f32 %v894, %v1352
    %v1389 = vmul.f32 %v900, %v1352
    %v1390 = vmul.f32 %v906, %v1352
    %v1391 = vmul.f32 %v913, %v1352
    %v1392 = vmul.f32 %v919, %v1353
    %v1393 = vmul.f32 %v925, %v1353
    %v1394 = vmul.f32 %v931, %v1353
    %v1395 = vmul.f32 %v937, %v1353
    %v1396 = vmul.f32 %v944, %v1353
    %v1397 = vmul.f32 %v950, %v1354
    %v1398 = vmul.f32 %v956, %v1354
    %v1399 = vmul.f32 %v962, %v1354
    %v1400 = vmul.f32 %v968, %v1354
    %v1401 = vmul.f32 %v975, %v1354
    %v1402 = vmul.f32 %v981, %v1355
    %v1403 = vmul.f32 %v987, %v1355
    %v1404 = vmul.f32 %v993, %v1355
    %v1405 = vmul.f32 %v999, %v1355
    %v1406 = vmul.f32 %v1006, %v1355
    %v1407 = vmul.f32 %v1012, %v1356
    %v1408 = vmul.f32 %v1018, %v1356
    %v1409 = vmul.f32 %v1024, %v1356
    %v1410 = vmul.f32 %v1030, %v1356
    %v1411 = vmul.f32 %v1037, %v1356
    %v1412 = vmul.f32 %v1043, %v1357
    %v1413 = vmul.f32 %v1049, %v1357
    %v1414 = vmul.f32 %v1055, %v1357
    %v1415 = vmul.f32 %v1061, %v1357
    %v1416 = vmul.f32 %v1068, %v1357
    %v1417 = vmul.f32 %v1074, %v1358
    %v1418 = vmul.f32 %v1080, %v1358
    %v1419 = vmul.f32 %v1086, %v1358
    %v1420 = vmul.f32 %v1092, %v1358
    %v1421 = vmul.f32 %v1099, %v1358
    %v1422 = vmul.f32 %v1105, %v1349
    %v1423 = vmul.f32 %v1111, %v1349
    %v1424 = vmul.f32 %v1117, %v1349
    %v1425 = vmul.f32 %v1123, %v1349
    %v1426 = vmul.f32 %v1130, %v1349
    %v1427 = vmul.f32 %v1136, %v1359
    %v1428 = vmul.f32 %v1142, %v1359
    %v1429 = vmul.f32 %v1148, %v1359
    %v1430 = vmul.f32 %v1154, %v1359
    %v1431 = vmul.f32 %v1161, %v1359
    %v1432 = vmul.f32 %v1167, %v1360
    %v1433 = vmul.f32 %v1173, %v1360
    %v1434 = vmul.f32 %v1179, %v1360
    %v1435 = vmul.f32 %v1185, %v1360
    %v1436 = vmul.f32 %v1192, %v1360
    %v1437 = vmul.f32 %v1198, %v1361
    %v1438 = vmul.f32 %v1204, %v1361
    %v1439 = vmul.f32 %v1210, %v1361
    %v1440 = vmul.f32 %v1216, %v1361
    %v1441 = vmul.f32 %v1223, %v1361
    %v1442 = vmul.f32 %v1229, %v1362
    %v1443 = vmul.f32 %v1235, %v1362
    %v1444 = vmul.f32 %v1241, %v1362
    %v1445 = vmul.f32 %v1247, %v1362
    %v1446 = vmul.f32 %v1254, %v1362
    %v1447 = vmul.f32 %v1260, %v1363
    %v1448 = vmul.f32 %v1266, %v1363
    %v1449 = vmul.f32 %v1272, %v1363
    %v1450 = vmul.f32 %v1278, %v1363
    %v1451 = vmul.f32 %v1285, %v1363
    %v1452 = vmul.f32 %v1291, %v1364
    %v1453 = vmul.f32 %v1297, %v1364
    %v1454 = vmul.f32 %v1303, %v1364
    %v1455 = vmul.f32 %v1309, %v1364
    %v1456 = vmul.f32 %v1316, %v1364
    %v1457 = vmul.f32 %v1322, %v1365
    %v1458 = vmul.f32 %v1328, %v1365
    %v1459 = vmul.f32 %v1334, %v1365
    %v1460 = vmul.f32 %v1340, %v1365
    %v1461 = vmul.f32 %v1347, %v1365
    %v1542 = vrot.slane %v1387, 7
    %v1543 = vsel %vm446, %v1542, %v1382
    %v1544 = vrot.slane %v1392, 6
    %v1545 = vsel %vm448, %v1544, %v1543
    %v1546 = vrot.slane %v1397, 5
    %v1547 = vsel %vm450, %v1546, %v1545
    %v1548 = vrot.slane %v1402, 4
    %v1549 = vsel %vm452, %v1548, %v1547
    %v1550 = vrot.slane %v1407, 3
    %v1551 = vsel %vm454, %v1550, %v1549
    %v1552 = vrot.slane %v1412, 2
    %v1553 = vsel %vm456, %v1552, %v1551
    %v1554 = vrot.slane %v1417, 1
    %v1555 = vsel %vm458, %v1554, %v1553
    %v1556 = vrot.slane %v1388, 7
    %v1557 = vsel %vm446, %v1556, %v1383
    %v1558 = vrot.slane %v1393, 6
    %v1559 = vsel %vm448, %v1558, %v1557
    %v1560 = vrot.slane %v1398, 5
    %v1561 = vsel %vm450, %v1560, %v1559
    %v1562 = vrot.slane %v1403, 4
    %v1563 = vsel %vm452, %v1562, %v1561
    %v1564 = vrot.slane %v1408, 3
    %v1565 = vsel %vm454, %v1564, %v1563
    %v1566 = vrot.slane %v1413, 2
    %v1567 = vsel %vm456, %v1566, %v1565
    %v1568 = vrot.slane %v1418, 1
    %v1569 = vsel %vm458, %v1568, %v1567
    %v1570 = vrot.slane %v1389, 7
    %v1571 = vsel %vm446, %v1570, %v1384
    %v1572 = vrot.slane %v1394, 6
    %v1573 = vsel %vm448, %v1572, %v1571
    %v1574 = vrot.slane %v1399, 5
    %v1575 = vsel %vm450, %v1574, %v1573
    %v1576 = vrot.slane %v1404, 4
    %v1577 = vsel %vm452, %v1576, %v1575
    %v1578 = vrot.slane %v1409, 3
    %v1579 = vsel %vm454, %v1578, %v1577
    %v1580 = vrot.slane %v1414, 2
    %v1581 = vsel %vm456, %v1580, %v1579
    %v1582 = vrot.slane %v1419, 1
    %v1583 = vsel %vm458, %v1582, %v1581
    %v1584 = vrot.slane %v1390, 7
    %v1585 = vsel %vm446, %v1584, %v1385
    %v1586 = vrot.slane %v1395, 6
    %v1587 = vsel %vm448, %v1586, %v1585
    %v1588 = vrot.slane %v1400, 5
    %v1589 = vsel %vm450, %v1588, %v1587
    %v1590 = vrot.slane %v1405, 4
    %v1591 = vsel %vm452, %v1590, %v1589
    %v1592 = vrot.slane %v1410, 3
    %v1593 = vsel %vm454, %v1592, %v1591
    %v1594 = vrot.slane %v1415, 2
    %v1595 = vsel %vm456, %v1594, %v1593
    %v1596 = vrot.slane %v1420, 1
    %v1597 = vsel %vm458, %v1596, %v1595
    %v1598 = vrot.slane %v1391, 7
    %v1599 = vsel %vm446, %v1598, %v1386
    %v1600 = vrot.slane %v1396, 6
    %v1601 = vsel %vm448, %v1600, %v1599
    %v1602 = vrot.slane %v1401, 5
    %v1603 = vsel %vm450, %v1602, %v1601
    %v1604 = vrot.slane %v1406, 4
    %v1605 = vsel %vm452, %v1604, %v1603
    %v1606 = vrot.slane %v1411, 3
    %v1607 = vsel %vm454, %v1606, %v1605
    %v1608 = vrot.slane %v1416, 2
    %v1609 = vsel %vm456, %v1608, %v1607
    %v1610 = vrot.slane %v1421, 1
    %v1611 = vsel %vm458, %v1610, %v1609
    %v1612 = vrot.slane %v1427, 7
    %v1613 = vsel %vm446, %v1612, %v1422
    %v1614 = vrot.slane %v1432, 6
    %v1615 = vsel %vm448, %v1614, %v1613
    %v1616 = vrot.slane %v1437, 5
    %v1617 = vsel %vm450, %v1616, %v1615
    %v1618 = vrot.slane %v1442, 4
    %v1619 = vsel %vm452, %v1618, %v1617
    %v1620 = vrot.slane %v1447, 3
    %v1621 = vsel %vm454, %v1620, %v1619
    %v1622 = vrot.slane %v1452, 2
    %v1623 = vsel %vm456, %v1622, %v1621
    %v1624 = vrot.slane %v1457, 1
    %v1625 = vsel %vm458, %v1624, %v1623
    %v1626 = vrot.slane %v1428, 7
    %v1627 = vsel %vm446, %v1626, %v1423
    %v1628 = vrot.slane %v1433, 6
    %v1629 = vsel %vm448, %v1628, %v1627
    %v1630 = vrot.slane %v1438, 5
    %v1631 = vsel %vm450, %v1630, %v1629
    %v1632 = vrot.slane %v1443, 4
    %v1633 = vsel %vm452, %v1632, %v1631
    %v1634 = vrot.slane %v1448, 3
    %v1635 = vsel %vm454, %v1634, %v1633
    %v1636 = vrot.slane %v1453, 2
    %v1637 = vsel %vm456, %v1636, %v1635
    %v1638 = vrot.slane %v1458, 1
    %v1639 = vsel %vm458, %v1638, %v1637
    %v1640 = vrot.slane %v1429, 7
    %v1641 = vsel %vm446, %v1640, %v1424
    %v1642 = vrot.slane %v1434, 6
    %v1643 = vsel %vm448, %v1642, %v1641
    %v1644 = vrot.slane %v1439, 5
    %v1645 = vsel %vm450, %v1644, %v1643
    %v1646 = vrot.slane %v1444, 4
    %v1647 = vsel %vm452, %v1646, %v1645
    %v1648 = vrot.slane %v1449, 3
    %v1649 = vsel %vm454, %v1648, %v1647
    %v1650 = vrot.slane %v1454, 2
    %v1651 = vsel %vm456, %v1650, %v1649
    %v1652 = vrot.slane %v1459, 1
    %v1653 = vsel %vm458, %v1652, %v1651
    %v1654 = vrot.slane %v1430, 7
    %v1655 = vsel %vm446, %v1654, %v1425
    %v1656 = vrot.slane %v1435, 6
    %v1657 = vsel %vm448, %v1656, %v1655
    %v1658 = vrot.slane %v1440, 5
    %v1659 = vsel %vm450, %v1658, %v1657
    %v1660 = vrot.slane %v1445, 4
    %v1661 = vsel %vm452, %v1660, %v1659
    %v1662 = vrot.slane %v1450, 3
    %v1663 = vsel %vm454, %v1662, %v1661
    %v1664 = vrot.slane %v1455, 2
    %v1665 = vsel %vm456, %v1664, %v1663
    %v1666 = vrot.slane %v1460, 1
    %v1667 = vsel %vm458, %v1666, %v1665
    %v1668 = vrot.slane %v1431, 7
    %v1669 = vsel %vm446, %v1668, %v1426
    %v1670 = vrot.slane %v1436, 6
    %v1671 = vsel %vm448, %v1670, %v1669
    %v1672 = vrot.slane %v1441, 5
    %v1673 = vsel %vm450, %v1672, %v1671
    %v1674 = vrot.slane %v1446, 4
    %v1675 = vsel %vm452, %v1674, %v1673
    %v1676 = vrot.slane %v1451, 3
    %v1677 = vsel %vm454, %v1676, %v1675
    %v1678 = vrot.slane %v1456, 2
    %v1679 = vsel %vm456, %v1678, %v1677
    %v1680 = vrot.slane %v1461, 1
    %v1681 = vsel %vm458, %v1680, %v1679
    %1692 = vst [vmem:[#allocation6] sm:$0xff] %v1555
    %1693 = vst [vmem:[#allocation6 + $0x8] sm:$0xff] %v1569
    %1694 = vst [vmem:[#allocation6 + $0x10] sm:$0xff] %v1583
    %1695 = vst [vmem:[#allocation6 + $0x18] sm:$0xff] %v1597
    %1696 = vst.msk [vmem:[#allocation6 + $0x20] sm:$0xff] %vm221, %v1611
    %1697 = vst [vmem:[#allocation6 + $0x28] sm:$0xff] %v1625
    %1698 = vst [vmem:[#allocation6 + $0x30] sm:$0xff] %v1639
    %1699 = vst [vmem:[#allocation6 + $0x38] sm:$0xff] %v1653
    %1700 = vst [vmem:[#allocation6 + $0x40] sm:$0xff] %v1667
    %1701 = vst.msk [vmem:[#allocation6 + $0x48] sm:$0xff] %vm221, %v1681
    // Predicated region
    $region18: #{tpu_custom_call.1} parent=1 // pred_check
      _
    $region19: #{tpu_custom_call.1} parent=1 // pred_check_branch
      %1703 = sbr.rel (0) target = $region21
    $region20: #{tpu_custom_call.1} parent=1 // pred_region
      %s1705 = ssub.s32 1280, 1280
      %1706 = vsyncadd [#allocation5], %s1705
      %s1707 = sshll.u32 [#allocation6], 4
      %s1708 = int_to_ptr.vmem [resolvable:$true] %s1707
      %1713 = dma.vmem_to_hbm [thread:$0]  %s1708, 1280, %s3, [#allocation5], 640, 640, 40
    $region21: #{tpu_custom_call.1} parent=1 // pred_fallthru
      _
    // Predicated region
    $region22: #{tpu_custom_call.1} parent=1 // pred_check
      _
    $region23: #{tpu_custom_call.1} parent=1 // pred_check_branch
      %1715 = sbr.rel (0) target = $region25
    $region24: #{tpu_custom_call.1} parent=1 // pred_region
      %1716 = dma.done [#allocation5], 1280
    $region25: #{tpu_custom_call.1} parent=1 // pred_fallthru
      _
    %1717 = vsyncpa [#allocation4], 1
    %1718 = vsyncpa [#allocation5], 1

</llo_original>
